<compile_context>
chip_gen: v6e
topology: v6e:2x2x1
jax: 0.10.0
libtpu: 0.0.40
codegen_flags: <defaults>
</compile_context>

<pallas_src>
import math
import functools

import jax
import jax.numpy as jnp
from jax.experimental import pallas as pl
from jax.experimental.pallas import tpu as pltpu


# ----------------------------------------------------------------------------
# Buffer construction (matches nn.Module.__init__ exactly).
# ----------------------------------------------------------------------------
def make_pe_table(d_model: int, max_len: int) -> jnp.ndarray:
    """Sinusoidal positional-encoding table, shape (max_len, d_model), f32."""
    assert d_model % 2 == 0, "PositionalEncoding requires an even d_model"
    position = jnp.arange(0, max_len, dtype=jnp.float32)[:, None]            # (L, 1)
    div_term = jnp.exp(
        jnp.arange(0, d_model, 2, dtype=jnp.float32) * (-math.log(10000.0) / d_model)
    )                                                                         # (D/2,)
    pe = jnp.zeros((max_len, d_model), dtype=jnp.float32)
    pe = pe.at[:, 0::2].set(jnp.sin(position * div_term))
    pe = pe.at[:, 1::2].set(jnp.cos(position * div_term))
    return pe


# ----------------------------------------------------------------------------
# Kernels — fused (rows = S*B, D) layout; every block is a dense 2-D tile.
# ----------------------------------------------------------------------------
def _pe_add_kernel(x_ref, pe_ref, e_ref, o_ref):
    """Eval / p==0 path: out = x + pe (pe batch-broadcast via selection matmul)."""
    pe_b = jnp.dot(e_ref[...], pe_ref[...], preferred_element_type=jnp.float32)
    o_ref[...] = (x_ref[...].astype(jnp.float32) + pe_b).astype(o_ref.dtype)


def _pe_add_dropout_kernel(x_ref, pe_ref, e_ref, m_ref, o_ref):
    """Training path: out = (x + pe) * mask, mask in {0, 1/(1-p)} streamed in."""
    pe_b = jnp.dot(e_ref[...], pe_ref[...], preferred_element_type=jnp.float32)
    y = x_ref[...].astype(jnp.float32) + pe_b
    o_ref[...] = (y * m_ref[...].astype(jnp.float32)).astype(o_ref.dtype)


# ----------------------------------------------------------------------------
# Tile sizing / VMEM budgeting (per-generation + per-dtype safe)
# ----------------------------------------------------------------------------
def _round_up(a: int, b: int) -> int:
    return -(-a // b) * b


def _lcm(a: int, b: int) -> int:
    return a * b // math.gcd(a, b)


def _vmem_limit_bytes() -> int:
    """Scoped VMEM limit: ~half of physical VMEM, capped at 64 MiB."""
    try:
        cap = int(pltpu.get_tpu_info().vmem_capacity_bytes)
    except Exception:
        cap = 64 * 1024 * 1024        # conservative fallback (v7x per-TC VMEM)
    return min(cap // 2, 64 * 1024 * 1024)


def _choose_row_tile(R: int, B: int, D: int, itemsize: int,
                     vmem_budget: int, training: bool) -> int:
    """Rows (of the fused S*B axis) per grid step."""
    gran = max(8, 32 // itemsize)                 # sublane granule: f32 8 / bf16 16 / i8 32
    # tR must be a multiple of the x-dtype granule and of B; also keep
    # tP = tR // B a multiple of 8 so the (tP, D) f32 pe BlockSpec is tile-aligned.
    align = _lcm(_lcm(gran, B), 8 * B)
    # Per-row VMEM bytes of one grid step: x, out (+ mask when training), each
    # double-buffered, plus ~2 full-block f32 temporaries (y, pe_b) and the
    # double-buffered pe slice (1/B as many rows).
    n_stream = 3 if training else 2
    per_row = D * (2 * n_stream * itemsize + 2 * 4)
    per_row += (2 * D * 4 + B - 1) // B
    max_rows = max(align, (vmem_budget // per_row) // align * align)
    tR = min(max_rows, 1024)                      # >~1K rows buys no bandwidth, only VMEM pressure
    if R >= 4 * align:                            # keep >= 4 grid steps: pipelining + dual-TC on v7x
        tR = min(tR, max(align, (R // 4) // align * align))
    return max(align, min(tR, _round_up(R, align)))


# ----------------------------------------------------------------------------
# Wrapper
# ----------------------------------------------------------------------------
@functools.partial(jax.jit, static_argnames=("p", "training", "row_tile"))
def positional_encoding(x, pe, seed, *, p: float = 0.1, training: bool = False,
                        row_tile: int | None = None):
    """x: (S, B, D), pe: (max_len, D), seed: () int32 (used only when training)."""
    if p >= 1.0 or p < 0.0:
        raise ValueError(f"dropout p must be in [0, 1), got {p}")

    S, B, D = x.shape
    R = S * B
    x2 = x.reshape(R, D)                          # free contiguous view: (s, b) -> row s*B + b
    pe_slice = pe[:S, :].astype(jnp.float32)

    itemsize = jnp.dtype(x.dtype).itemsize
    vmem_limit = _vmem_limit_bytes()
    use_dropout = bool(training) and p > 0.0

    tR = row_tile if row_tile is not None else _choose_row_tile(
        R, B, D, itemsize, vmem_limit, use_dropout)
    tR = max(B, min(int(tR), _round_up(R, B)))
    assert tR % B == 0, "row tile must be a multiple of the batch size"
    tP = tR // B
    grid = (pl.cdiv(R, tR),)

    # 0/1 selection matrix: fused row r of a block uses pe row r // B.
    # Constant block index -> DMA'd into VMEM once and reused by every grid step.
    expand = (jnp.arange(tR)[:, None] // B == jnp.arange(tP)[None, :]).astype(jnp.float32)

    compiler_params = pltpu.CompilerParams(
        dimension_semantics=("parallel",),        # shard/pipeline the row axis (2 TCs on v7x)
        vmem_limit_bytes=vmem_limit,
    )
    out_shape = jax.ShapeDtypeStruct((R, D), x.dtype)

    row_spec = pl.BlockSpec((tR, D), lambda i: (i, 0))       # dense, contiguous blocks
    pe_spec = pl.BlockSpec((tP, D), lambda i: (i, 0))        # read-once pe slice per step
    e_spec = pl.BlockSpec((tR, tP), lambda i: (0, 0))        # resident selection matrix

    if use_dropout:
        key = jax.random.PRNGKey(seed)
        keep = jax.random.bernoulli(key, 1.0 - p, (R, D))
        mask = jnp.where(keep, jnp.float32(1.0 / (1.0 - p)),
                         jnp.float32(0.0)).astype(x.dtype)
        out2 = pl.pallas_call(
            _pe_add_dropout_kernel,
            out_shape=out_shape,
            grid=grid,
            in_specs=[row_spec, pe_spec, e_spec, row_spec],
            out_specs=row_spec,
            compiler_params=compiler_params,
        )(x2, pe_slice, expand, mask)
    else:
        out2 = pl.pallas_call(
            _pe_add_kernel,
            out_shape=out_shape,
            grid=grid,
            in_specs=[row_spec, pe_spec, e_spec],
            out_specs=row_spec,
            compiler_params=compiler_params,
        )(x2, pe_slice, expand)

    return out2.reshape(S, B, D)


# ----------------------------------------------------------------------------
# Demo / correctness check
# ----------------------------------------------------------------------------
if __name__ == "__main__":
    d_model = 128      # lane-dense last dim
    max_len = 64
    seq_len = 32
    batch = 4          # small batch: exercises the fused-row dense layout

    key = jax.random.PRNGKey(0)
    x = jax.random.normal(key, (seq_len, batch, d_model), dtype=jnp.float32)

    pe = make_pe_table(d_model, max_len)
    seed = jnp.int32(0)
    ref = x + pe[:seq_len][:, None, :]

    # --- Eval-mode forward (dropout is identity): deterministic, exact check.
    # Auto tiling gives tR=32 -> a 4-step pipelined grid (tP=8, tile-aligned pe).
    out = positional_encoding(x, pe, seed, p=0.1, training=False)
    out = jax.block_until_ready(out)
    assert out.shape == (seq_len, batch, d_model)
    assert out.dtype == x.dtype
    assert jnp.allclose(out, ref, atol=1e-6, rtol=1e-6)

    # --- Training-mode forward: every element is either 0 or ref / (1 - p).
    p_train = 0.5
    out_t = positional_encoding(x, pe, seed, p=p_train, training=True)
    out_t = jax.block_until_ready(out_t)
    assert out_t.shape == (seq_len, batch, d_model)
    scaled = ref / (1.0 - p_train)
    is_zero = jnp.isclose(out_t, 0.0, atol=1e-6)
    is_kept = jnp.isclose(out_t, scaled, atol=1e-5, rtol=1e-5)
    assert bool(jnp.all(is_zero | is_kept))
    zero_frac = float(jnp.mean(is_zero.astype(jnp.float32)))
    assert 0.05 < zero_frac < 0.95, f"suspicious dropout zero fraction {zero_frac}"

    print("KERNEL_OK")
</pallas_src>

<mosaic_0001>
module attributes {stable_mosaic.version = 11 : i64} {
  func.func @_pe_add_kernel(%arg0: i32, %arg1: memref<32x128xf32, #tpu.memory_space<vmem>>, %arg2: memref<8x128xf32, #tpu.memory_space<vmem>>, %arg3: memref<32x8xf32, #tpu.memory_space<vmem>>, %arg4: memref<32x128xf32, #tpu.memory_space<vmem>>) attributes {dimension_semantics = [#tpu.dimension_semantics<parallel>], iteration_bounds = array<i64: 4>, scalar_prefetch = 0 : i64, scratch_operands = 0 : i64, tpu.core_type = #tpu.core_type<tc>, window_params = [{transform_indices = @transform_0, window_bounds = array<i64: 32, 128>}, {transform_indices = @transform_1, window_bounds = array<i64: 8, 128>}, {pipeline_mode = #tpu.pipeline_mode<synchronous>, transform_indices = @transform_2, window_bounds = array<i64: 32, 8>}, {transform_indices = @transform_3, window_bounds = array<i64: 32, 128>}]} {
    %c0 = arith.constant 0 : index
    %c0_0 = arith.constant 0 : index
    %0 = vector.load %arg3[%c0, %c0_0] : memref<32x8xf32, #tpu.memory_space<vmem>>, vector<32x8xf32>
    %c0_1 = arith.constant 0 : index
    %c0_2 = arith.constant 0 : index
    %1 = vector.load %arg2[%c0_1, %c0_2] : memref<8x128xf32, #tpu.memory_space<vmem>>, vector<8x128xf32>
    %cst = arith.constant dense<0.000000e+00> : vector<32x128xf32>
    %2 = tpu.matmul %0, %1, %cst {dimension_numbers = #tpu.dot_dimension_numbers<[1], [0], [0], [1], [0, 0, 1, 1], [], []>} : vector<32x8xf32>, vector<8x128xf32>, vector<32x128xf32> -> vector<32x128xf32>
    %c0_3 = arith.constant 0 : index
    %c0_4 = arith.constant 0 : index
    %3 = vector.load %arg1[%c0_3, %c0_4] : memref<32x128xf32, #tpu.memory_space<vmem>>, vector<32x128xf32>
    %4 = arith.addf %3, %2 : vector<32x128xf32>
    %c0_5 = arith.constant 0 : index
    %c0_6 = arith.constant 0 : index
    %5 = vector.load %arg4[%c0_5, %c0_6] : memref<32x128xf32, #tpu.memory_space<vmem>>, vector<32x128xf32>
    tpu.vector_store %arg4[%c0_5, %c0_6], %4 {strides = array<i32>} : memref<32x128xf32, #tpu.memory_space<vmem>>, vector<32x128xf32>,
    return
  }
  func.func @transform_0(%arg0: i32) -> (i32, i32) {
    %c0_i32 = arith.constant 0 : i32
    %c0_i32_0 = arith.constant 0 : i32
    return %arg0, %c0_i32 : i32, i32
  }
  func.func @transform_1(%arg0: i32) -> (i32, i32) {
    %c0_i32 = arith.constant 0 : i32
    %c0_i32_0 = arith.constant 0 : i32
    return %arg0, %c0_i32 : i32, i32
  }
  func.func @transform_2(%arg0: i32) -> (i32, i32) {
    %c0_i32 = arith.constant 0 : i32
    %c0_i32_0 = arith.constant 0 : i32
    %c0_i32_1 = arith.constant 0 : i32
    return %c0_i32, %c0_i32_0 : i32, i32
  }
  func.func @transform_3(%arg0: i32) -> (i32, i32) {
    %c0_i32 = arith.constant 0 : i32
    %c0_i32_0 = arith.constant 0 : i32
    return %arg0, %c0_i32 : i32, i32
  }
}

</mosaic_0001>

<llo_original>
// kernel: positional_encoding.1
$region0: #{positional_encoding.1}
  #allocation0 [shape = 'u32[]', space=smem, size = 0x4, offset = 0x4, fixed_abs, tag = 'smem constant byte address 0x4 - core index']
  #allocation1 [shape = 'u32[144,128]{1,0:T(1,128)}', space=vmem, size = 0x12000, scoped, tag = 'internal scratch']
  %s0 = inlined_call_operand.hbm [shape: f32[128,128], index: 0, kind: input, shape index: {}]
  %s1 = inlined_call_operand.vmem [shape: f32[32,128], index: 1, kind: input, shape index: {}]
  %s2 = inlined_call_operand.vmem [shape: f32[32,8], index: 2, kind: input, shape index: {}]
  %s3 = inlined_call_operand.hbm [shape: f32[128,128], index: 3, kind: output, shape index: {}]
  %s4 = sld [smem:[#allocation0]]
  $region49: #{positional_encoding.1} parent=0
    _
  %s6 = ssub.s32 1, %s4
  %s7 = scalar_select 0, %s6, %s4
  $region1: #{positional_encoding.1} parent=0
    #allocation2 [shape = 'u8[32768]{0}', space=vmem, size = 0x8000, scoped, tag = 'input window, operand 0']
    #allocation3 [shape = 's32[2]{0}', space=sflag, size = 0x8, scoped, tag = 'scoped memory for positional_encoding.1']
    #allocation4 [shape = 's32[2]{0}', space=sflag, size = 0x8, scoped, tag = 'scoped memory for positional_encoding.1']
    #allocation5 [shape = 'u8[32768]{0}', space=vmem, size = 0x8000, scoped, tag = 'output window, operand 0']
    %8 = vsyncpa [#allocation3], 0
    %s9 = scalar_lea.sflag [#allocation3], 1
    %10 = vsyncpa %s9, 0
    %11 = vsyncpa [#allocation4], 0
    %s12 = scalar_lea.sflag [#allocation4], 1
    %13 = vsyncpa %s12, 0
    loop: start=0, step=1, limit=6
    $region2: #{positional_encoding.1} parent=1 // loop_pre_header
      _
    $region3: #{positional_encoding.1} parent=1 // loop_header
      %s15 = sphi 0, %s19
      %p16 = scmp.ge.s32.totalorder %s15, 6
      %s25 = sphi 0, %s27
      %s28 = sphi 0, %s25
      %s29 = sphi 0, %s28
      %s45 = sphi 0, %s29
      %s51 = sphi 0, %s53
      %s54 = sphi 0, %s51
      %s55 = sphi 0, %s54
      %s71 = sphi 0, %s55
      %s75 = sphi 0, %s75
      %s77 = sphi 0, %s75
      %s78 = sphi 0, %s77
      %s92 = sphi 0, %s78
      %s98 = sphi 0, %s100
      %s101 = sphi 0, %s98
      %s102 = sphi 0, %s101
      %s118 = sphi 0, %s102
    $region4: #{positional_encoding.1} parent=1 // loop_header_branch
      %18 = sbr.rel (%p16) target = $region8
    $region5: #{positional_encoding.1} parent=1 // loop_body
      %s20 = ssub.s32 %s15, 1
      %s21 = ssub.s32 %s15, 2
      %s22 = sadd.s32 %s15, 1
      %s23 = ssub.s32 %s15, %s22
      %p24 = scmp.eq.s32.totalorder %s23, 0
      %s26 = sadd.s32 %s25, 1
      %s27 = scalar_select %p24, %s25, %s26
      %p30 = pneg %p24
      %p31 = scmp.eq.s32.totalorder %s15, 3
      %p32 = por %p30, %p31
      %p33 = scmp.ne.s32.totalorder %s25, %s28
      %p34 = scmp.eq.s32.totalorder %s15, 0
      %p35 = por %p33, %p34
      %p36 = scmp.ne.s32.totalorder %s25, %s28
      %p37 = scmp.eq.s32.totalorder %s20, 3
      %p38 = por %p36, %p37
      %p39 = scmp.ne.s32.totalorder %s28, %s29
      %p40 = scmp.eq.s32.totalorder %s20, 0
      %p41 = por %p39, %p40
      %p42 = scmp.ne.s32.totalorder %s28, %s29
      %p43 = scmp.eq.s32.totalorder %s21, 3
      %p44 = por %p42, %p43
      %p46 = scmp.ne.s32.totalorder %s29, %s45
      %p47 = scmp.eq.s32.totalorder %s21, 0
      %p48 = por %p46, %p47
      %s49 = ssub.s32 %s15, %s22
      %p50 = scmp.eq.s32.totalorder %s49, 0
      %s52 = sadd.s32 %s51, 1
      %s53 = scalar_select %p50, %s51, %s52
      %p56 = pneg %p50
      %p57 = scmp.eq.s32.totalorder %s15, 3
      %p58 = por %p56, %p57
      %p59 = scmp.ne.s32.totalorder %s51, %s54
      %p60 = scmp.eq.s32.totalorder %s15, 0
      %p61 = por %p59, %p60
      %p62 = scmp.ne.s32.totalorder %s51, %s54
      %p63 = scmp.eq.s32.totalorder %s20, 3
      %p64 = por %p62, %p63
      %p65 = scmp.ne.s32.totalorder %s54, %s55
      %p66 = scmp.eq.s32.totalorder %s20, 0
      %p67 = por %p65, %p66
      %p68 = scmp.ne.s32.totalorder %s54, %s55
      %p69 = scmp.eq.s32.totalorder %s21, 3
      %p70 = por %p68, %p69
      %p72 = scmp.ne.s32.totalorder %s55, %s71
      %p73 = scmp.eq.s32.totalorder %s21, 0
      %p74 = por %p72, %p73
      %s76 = sadd.s32 %s75, 1
      %p79 = scmp.eq.s32.totalorder %s15, 3
      %p80 = scmp.ne.s32.totalorder %s75, %s77
      %p81 = scmp.eq.s32.totalorder %s15, 0
      %p82 = por %p80, %p81
      %p83 = scmp.ne.s32.totalorder %s75, %s77
      %p84 = scmp.eq.s32.totalorder %s20, 3
      %p85 = por %p83, %p84
      %p86 = scmp.ne.s32.totalorder %s77, %s78
      %p87 = scmp.eq.s32.totalorder %s20, 0
      %p88 = por %p86, %p87
      %p89 = scmp.ne.s32.totalorder %s77, %s78
      %p90 = scmp.eq.s32.totalorder %s21, 3
      %p91 = por %p89, %p90
      %p93 = scmp.ne.s32.totalorder %s78, %s92
      %p94 = scmp.eq.s32.totalorder %s21, 0
      %p95 = por %p93, %p94
      %s96 = ssub.s32 %s15, %s22
      %p97 = scmp.eq.s32.totalorder %s96, 0
      %s99 = sadd.s32 %s98, 1
      %s100 = scalar_select %p97, %s98, %s99
      %p103 = pneg %p97
      %p104 = scmp.eq.s32.totalorder %s15, 3
      %p105 = por %p103, %p104
      %p106 = scmp.ne.s32.totalorder %s98, %s101
      %p107 = scmp.eq.s32.totalorder %s15, 0
      %p108 = por %p106, %p107
      %p109 = scmp.ne.s32.totalorder %s98, %s101
      %p110 = scmp.eq.s32.totalorder %s20, 3
      %p111 = por %p109, %p110
      %p112 = scmp.ne.s32.totalorder %s101, %s102
      %p113 = scmp.eq.s32.totalorder %s20, 0
      %p114 = por %p112, %p113
      %p115 = scmp.ne.s32.totalorder %s101, %s102
      %p116 = scmp.eq.s32.totalorder %s21, 3
      %p117 = por %p115, %p116
      %p119 = scmp.ne.s32.totalorder %s102, %s118
      %p120 = scmp.eq.s32.totalorder %s21, 0
      %p121 = por %p119, %p120
      %p122 = scmp.le.s32.totalorder 1, %s15
      %p123 = scmp.lt.s32.totalorder %s15, 5
      %p124 = pnand %p122, %p123
      %p125 = pneg %p124
      // Predicated region
      $region9: #{positional_encoding.1} parent=5 // pred_check
        _
      $region10: #{positional_encoding.1} parent=5 // pred_check_branch
        %127 = sbr.rel (%p124) target = $region12
      $region11: #{positional_encoding.1} parent=5 // pred_region
        %s128 = ssub.s32 %s15, 1
        // Predicated region
        $region13: #{positional_encoding.1} parent=11 // pred_check
          %p129 = pneg %p88
        $region14: #{positional_encoding.1} parent=11 // pred_check_branch
          %131 = sbr.rel (%p129) target = $region16
        $region15: #{positional_encoding.1} parent=11 // pred_region
          _
        $region16: #{positional_encoding.1} parent=11 // pred_fallthru
          _
      $region12: #{positional_encoding.1} parent=5 // pred_fallthru
        _
      %p132 = scmp.lt.s32.totalorder %s15, 4
      // Predicated region
      $region17: #{positional_encoding.1} parent=5 // pred_check
        %p133 = pneg %p132
      $region18: #{positional_encoding.1} parent=5 // pred_check_branch
        %135 = sbr.rel (%p133) target = $region20
      $region19: #{positional_encoding.1} parent=5 // pred_region
        // Predicated region
        $region21: #{positional_encoding.1} parent=19 // pred_check
          %p136 = pneg %p35
        $region22: #{positional_encoding.1} parent=19 // pred_check_branch
          %138 = sbr.rel (%p136) target = $region24
        $region23: #{positional_encoding.1} parent=19 // pred_region
          %s139 = sand.u32 %s25, 1
          %s140 = scalar_lea.sflag [#allocation3], %s139
          %s141 = sand.u32 %s25, 1
          %s142 = smul.addr %s141, 32
          %s143 = scalar_lea.vmem [#allocation2], %s142
          %s144 = smul.u32 4, %s15
          %s146 = ssub.s32 512, 512
          %147 = vsyncadd %s140, %s146
          %s148 = smul.addr %s144, 128
          %s149 = scalar_lea.hbm %s0, %s148
          %s150 = sshll.u32 %s143, 4
          %s151 = int_to_ptr.vmem [resolvable:$true] %s150
          %156 = dma.hbm_to_vmem [thread:$0]  %s149, 512, %s151, %s140, 128, 128, 8
        $region24: #{positional_encoding.1} parent=19 // pred_fallthru
          _
        // Predicated region
        $region25: #{positional_encoding.1} parent=19 // pred_check
          %p157 = pneg %p61
        $region26: #{positional_encoding.1} parent=19 // pred_check_branch
          %159 = sbr.rel (%p157) target = $region28
        $region27: #{positional_encoding.1} parent=19 // pred_region
          %p160 = scmp.lt.s32.totalorder %s15, 3
          %s161 = scalar_select %p160, %s15, 3
          %s162 = smul.addr %s161, 8
          %s163 = scalar_lea.vmem %s1, %s162
        $region28: #{positional_encoding.1} parent=19 // pred_fallthru
          _
      $region20: #{positional_encoding.1} parent=5 // pred_fallthru
        _
      %p164 = scmp.le.s32.totalorder 1, %s15
      %p165 = scmp.lt.s32.totalorder %s15, 5
      %p166 = pnand %p164, %p165
      %p167 = pneg %p166
      // Predicated region
      $region29: #{positional_encoding.1} parent=5 // pred_check
        _
      $region30: #{positional_encoding.1} parent=5 // pred_check_branch
        %169 = sbr.rel (%p166) target = $region32
      $region31: #{positional_encoding.1} parent=5 // pred_region
        %s170 = ssub.s32 %s15, 1
        %s171 = sand.u32 %s28, 1
        %s172 = scalar_lea.sflag [#allocation3], %s171
        %s173 = sand.u32 %s28, 1
        %s174 = smul.addr %s173, 32
        %s175 = scalar_lea.vmem [#allocation2], %s174
        // Predicated region
        $region33: #{positional_encoding.1} parent=31 // pred_check
          %p176 = pneg %p41
        $region34: #{positional_encoding.1} parent=31 // pred_check_branch
          %178 = sbr.rel (%p176) target = $region36
        $region35: #{positional_encoding.1} parent=31 // pred_region
          %179 = dma.done %s172, 512
        $region36: #{positional_encoding.1} parent=31 // pred_fallthru
          _
        %s180 = sand.u32 %s28, 1
        %s181 = scalar_lea.sflag [#allocation3], %s180
        %s182 = sand.u32 %s28, 1
        %s183 = smul.addr %s182, 32
        %s184 = scalar_lea.vmem [#allocation2], %s183
        %p185 = pneg %p41
        %p186 = pneg %p38
        %p187 = scmp.lt.s32.totalorder %s20, 3
        %s188 = scalar_select %p187, %s20, 3
        %s189 = smul.addr %s188, 8
        %s190 = scalar_lea.vmem %s1, %s189
        %p191 = pneg %p67
        %p192 = pneg %p64
        %p193 = pneg %p88
        %p194 = pneg %p85
        %p195 = pneg %p114
        %p196 = pneg %p111
        %s197 = sand.u32 %s101, 1
        %s198 = scalar_lea.sflag [#allocation4], %s197
        %s199 = sand.u32 %s101, 1
        %s200 = smul.addr %s199, 32
        %s201 = scalar_lea.vmem [#allocation5], %s200
        %s202 = smul.u32 4, %s20
        %p203 = scmp.lt.s32.totalorder %s20, 3
        %s204 = scalar_select %p203, %s20, 3
        %s205 = smul.addr %s204, 8
        %s206 = scalar_lea.vmem %s1, %s205
        %s207 = smul.u32 4, %s20
        %v208 = vld [vmem:[%s2] sm:$0xff]
        %v209 = vld [vmem:[%s2 + $0x8] sm:$0xff]
        %v210 = vld [vmem:[%s2 + $0x10] sm:$0xff]
        %v211 = vld [vmem:[%s2 + $0x18] sm:$0xff]
        %v212 = vld [vmem:[%s206] sm:$0xff]
        %vm213 = vcmask 64512
        %v215 = vsel %vm213, %v208, 0
        %v218 = vsel %vm213, %v209, 0
        %v221 = vsel %vm213, %v210, 0
        %v224 = vsel %vm213, %v211, 0
        %226 = vmatprep.subr.mxu0 0.0
        %227 = vmatpush1.msra.mxu0 0.0
        %228 = vmatprep.subr.mxu0 0.0
        %229 = vmatpush1.msra.mxu0 0.0
        %230 = vmatprep.subr.mxu0 0.0
        %231 = vmatpush1.msra.mxu0 0.0
        %232 = vmatprep.subr.mxu0 0.0
        %233 = vmatpush1.msra.mxu0 0.0
        %234 = vmatprep.subr.mxu0 0.0
        %235 = vmatpush1.msra.mxu0 0.0
        %236 = vmatprep.subr.mxu0 0.0
        %237 = vmatpush1.msra.mxu0 0.0
        %238 = vmatprep.subr.mxu0 0.0
        %239 = vmatpush1.msra.mxu0 0.0
        %240 = vmatprep.subr.mxu0 0.0
        %241 = vmatpush1.msra.mxu0 0.0
        %242 = vmatprep.subr.mxu0 0.0
        %243 = vmatpush1.msra.mxu0 0.0
        %244 = vmatprep.subr.mxu0 0.0
        %245 = vmatpush1.msra.mxu0 0.0
        %246 = vmatprep.subr.mxu0 0.0
        %247 = vmatpush1.msra.mxu0 0.0
        %248 = vmatprep.subr.mxu0 0.0
        %249 = vmatpush1.msra.mxu0 0.0
        %250 = vmatprep.subr.mxu0 0.0
        %251 = vmatpush1.msra.mxu0 0.0
        %252 = vmatprep.subr.mxu0 0.0
        %253 = vmatpush1.msra.mxu0 0.0
        %254 = vmatprep.subr.mxu0 0.0
        %255 = vmatpush1.msra.mxu0 0.0
        %256 = vmatprep.subr.mxu0 0.0
        %257 = vmatpush1.msra.mxu0 %v212
        %258 = vmatprep.subr.mxu0 0.0
        %259 = vmatpush2.msra.mxu0 0.0
        %260 = vmatprep.subr.mxu0 0.0
        %261 = vmatpush2.msra.mxu0 0.0
        %262 = vmatprep.subr.mxu0 0.0
        %263 = vmatpush2.msra.mxu0 0.0
        %264 = vmatprep.subr.mxu0 0.0
        %265 = vmatpush2.msra.mxu0 0.0
        %266 = vmatprep.subr.mxu0 0.0
        %267 = vmatpush2.msra.mxu0 0.0
        %268 = vmatprep.subr.mxu0 0.0
        %269 = vmatpush2.msra.mxu0 0.0
        %270 = vmatprep.subr.mxu0 0.0
        %271 = vmatpush2.msra.mxu0 0.0
        %272 = vmatprep.subr.mxu0 0.0
        %273 = vmatpush2.msra.mxu0 0.0
        %274 = vmatprep.subr.mxu0 0.0
        %275 = vmatpush2.msra.mxu0 0.0
        %276 = vmatprep.subr.mxu0 0.0
        %277 = vmatpush2.msra.mxu0 0.0
        %278 = vmatprep.subr.mxu0 0.0
        %279 = vmatpush2.msra.mxu0 0.0
        %280 = vmatprep.subr.mxu0 0.0
        %281 = vmatpush2.msra.mxu0 0.0
        %282 = vmatprep.subr.mxu0 0.0
        %283 = vmatpush2.msra.mxu0 0.0
        %284 = vmatprep.subr.mxu0 0.0
        %285 = vmatpush2.msra.mxu0 0.0
        %286 = vmatprep.subr.mxu0 0.0
        %287 = vmatpush2.msra.mxu0 0.0
        %288 = vmatprep.subr.mxu0 0.0
        %289 = vmatpush2.msra.mxu0 0.0
        %290 = vmatprep.mubr.f32.mxu0 0.0
        %291 = vmatmul.mubr.f32.gmra.mxu0 %v215
        %v292 = vpop.f32.mrf.mxu0
        %v293 = vadd.f32 0.0, %v292
        %v294 = vpop.f32.mrf.mxu0
        %295 = vmatprep.mubr.f32.mxu0 0.0
        %296 = vmatmul.mubr.f32.gmra.mxu0 %v218
        %v297 = vpop.f32.mrf.mxu0
        %v298 = vadd.f32 0.0, %v297
        %v299 = vpop.f32.mrf.mxu0
        %300 = vmatprep.mubr.f32.mxu0 0.0
        %301 = vmatmul.mubr.f32.gmra.mxu0 %v221
        %v302 = vpop.f32.mrf.mxu0
        %v303 = vadd.f32 0.0, %v302
        %v304 = vpop.f32.mrf.mxu0
        %305 = vmatprep.mubr.f32.mxu0 0.0
        %306 = vmatmul.mubr.f32.gmra.mxu0 %v224
        %v307 = vpop.f32.mrf.mxu0
        %v308 = vadd.f32 0.0, %v307
        %v309 = vpop.f32.mrf.mxu0
        %310 = vdwg.mxu0
        %v311 = vld [vmem:[%s175] sm:$0xff]
        %v312 = vld [vmem:[%s175 + $0x8] sm:$0xff]
        %v313 = vld [vmem:[%s175 + $0x10] sm:$0xff]
        %v314 = vld [vmem:[%s175 + $0x18] sm:$0xff]
        %v315 = vadd.f32 %v311, %v293
        %v316 = vadd.f32 %v312, %v298
        %v317 = vadd.f32 %v313, %v303
        %v318 = vadd.f32 %v314, %v308
        %319 = vst [vmem:[%s201] sm:$0xff] %v315
        %320 = vst [vmem:[%s201 + $0x8] sm:$0xff] %v316
        %321 = vst [vmem:[%s201 + $0x10] sm:$0xff] %v317
        %322 = vst [vmem:[%s201 + $0x18] sm:$0xff] %v318
        %s323 = sand.u32 %s101, 1
        %s324 = scalar_lea.sflag [#allocation4], %s323
        %s325 = sand.u32 %s101, 1
        %s326 = smul.addr %s325, 32
        %s327 = scalar_lea.vmem [#allocation5], %s326
        // Predicated region
        $region37: #{positional_encoding.1} parent=31 // pred_check
          %p328 = pneg %p111
        $region38: #{positional_encoding.1} parent=31 // pred_check_branch
          %330 = sbr.rel (%p328) target = $region40
        $region39: #{positional_encoding.1} parent=31 // pred_region
          %s331 = smul.u32 4, %s20
          %s333 = ssub.s32 512, 512
          %334 = vsyncadd %s324, %s333
          %s335 = smul.addr %s331, 128
          %s336 = scalar_lea.hbm %s3, %s335
          %s337 = sshll.u32 %s327, 4
          %s338 = int_to_ptr.vmem [resolvable:$true] %s337
          %343 = dma.vmem_to_hbm [thread:$0]  %s338, 512, %s336, %s324, 128, 128, 8
        $region40: #{positional_encoding.1} parent=31 // pred_fallthru
          _
      $region32: #{positional_encoding.1} parent=5 // pred_fallthru
        _
      %p344 = scmp.le.s32.totalorder 2, %s15
      // Predicated region
      $region41: #{positional_encoding.1} parent=5 // pred_check
        %p345 = pneg %p344
      $region42: #{positional_encoding.1} parent=5 // pred_check_branch
        %347 = sbr.rel (%p345) target = $region44
      $region43: #{positional_encoding.1} parent=5 // pred_region
        %s348 = ssub.s32 %s15, 2
        // Predicated region
        $region45: #{positional_encoding.1} parent=43 // pred_check
          %p349 = pneg %p117
        $region46: #{positional_encoding.1} parent=43 // pred_check_branch
          %351 = sbr.rel (%p349) target = $region48
        $region47: #{positional_encoding.1} parent=43 // pred_region
          %s352 = sand.u32 %s102, 1
          %s353 = scalar_lea.sflag [#allocation4], %s352
          %s354 = sand.u32 %s102, 1
          %s355 = smul.addr %s354, 32
          %s356 = scalar_lea.vmem [#allocation5], %s355
          %357 = dma.done %s353, 512
        $region48: #{positional_encoding.1} parent=43 // pred_fallthru
          _
      $region44: #{positional_encoding.1} parent=5 // pred_fallthru
        _
    $region6: #{positional_encoding.1} parent=1 // loop_footer
      %s19 = sadd.s32 1, %s15
    $region7: #{positional_encoding.1} parent=1 // loop_footer_branch
      %14 = sbr.rel target = $region3
    $region8: #{positional_encoding.1} parent=1 // loop_exit
      _
    %358 = vsyncpa [#allocation3], 1
    %s359 = scalar_lea.sflag [#allocation3], 1
    %360 = vsyncpa %s359, 1
    %361 = vsyncpa [#allocation4], 1
    %s362 = scalar_lea.sflag [#allocation4], 1
    %363 = vsyncpa %s362, 1

</llo_original>
